<compile_context>
chip_gen: v6e
topology: v6e:2x2x1
jax: 0.10.0
libtpu: 0.0.40
codegen_flags: <defaults>
</compile_context>

<pallas_src>
import functools

import numpy as np
import jax
import jax.numpy as jnp
from jax.experimental import pallas as pl
from jax.experimental.pallas import tpu as pltpu


def _round_up(a: int, b: int) -> int:
    return (a + b - 1) // b * b


def _pair_kernel(x_ref, idx_ref, out_ref, *, cb: int):
    # x_ref:   (B_pad, 1)  f32  -- full (zero-padded) x column, grid-resident
    # idx_ref: (2, TP)     i32  -- row 0 = "i" indices, row 1 = "j" indices
    # out_ref: (2, TP)     f32  -- row 0 = x1 tile,    row 1 = x2 tile
    b_pad = x_ref.shape[0]
    tp = idx_ref.shape[1]
    n_chunks = b_pad // cb

    idx_i = idx_ref[0:1, :]                                   # (1, TP) i32
    idx_j = idx_ref[1:2, :]                                   # (1, TP) i32

    def body(c, carry):
        x1_acc, x2_acc = carry
        row0 = pl.multiple_of(c * cb, cb)
        x_chunk = x_ref[pl.ds(row0, cb), :]                   # (cb, 1) f32
        # Small sublane iota for this chunk; broadcasting in the compare
        # avoids materializing a (B, TP) iota per grid step.
        rows = jax.lax.broadcasted_iota(jnp.int32, (cb, 1), 0) + row0
        hit_i = rows == idx_i                                 # (cb, TP) bool
        hit_j = rows == idx_j                                 # (cb, TP) bool
        # Exactly one row matches per (valid) column, so the f32 sum is exact.
        x1_acc = x1_acc + jnp.sum(jnp.where(hit_i, x_chunk, 0.0),
                                  axis=0, keepdims=True)      # (1, TP)
        x2_acc = x2_acc + jnp.sum(jnp.where(hit_j, x_chunk, 0.0),
                                  axis=0, keepdims=True)      # (1, TP)
        return x1_acc, x2_acc

    zero = jnp.zeros((1, tp), jnp.float32)
    x1, x2 = jax.lax.fori_loop(0, n_chunks, body, (zero, zero))

    # Static row-slice stores (zero-cost ref views); no sublane concatenate.
    out_ref[0:1, :] = x1
    out_ref[1:2, :] = x2


@functools.lru_cache(maxsize=32)
def _pair_index_table(batch_size: int, p_pad: int):
    """Merged (2, P_pad) int32 table of (i, j) upper-triangle indices."""
    ii, jj = np.triu_indices(batch_size, k=1)
    idx = np.zeros((2, p_pad), dtype=np.int32)   # padded cols gather index 0
    idx[0, :ii.size] = ii
    idx[1, :jj.size] = jj
    return jnp.asarray(idx)


def pair_generation(x: jax.Array, batch_size: int, use_pallas=None):
    """Equivalent of PairGeneration(batch_size).forward(x) for 1-D x."""
    B = batch_size
    assert x.shape == (B,)
    P = B * (B - 1) // 2

    if P == 0:
        z = jnp.zeros((0,), dtype=jnp.float32)
        return z, z

    if use_pallas is None:
        # Fixed pallas_call cost dominates for tiny P; use an XLA gather then.
        use_pallas = P >= 4096
    if not use_pallas:
        ii, jj = np.triu_indices(B, k=1)
        xf = x.astype(jnp.float32)
        return xf[jnp.asarray(ii)], xf[jnp.asarray(jj)]

    # ---- Pair-axis tiling: lane-dense, multiple of 128, large tiles --------
    LANE = 128
    p128 = _round_up(P, LANE)
    TP = min(2048, p128)
    # Prefer >= 2 grid tiles so the "parallel" axis can shard across the two
    # TensorCores on v7x.
    if p128 // TP < 2 and p128 >= 2 * LANE:
        TP = _round_up(p128 // 2, LANE)
    P_pad = _round_up(P, TP)
    n_tiles = P_pad // TP

    # ---- Batch-axis chunking: per-step footprint independent of B ----------
    CB = min(128, _round_up(B, 8))
    B_pad = _round_up(B, CB)

    idx = _pair_index_table(B, P_pad)
    x_col = jnp.zeros((B_pad, 1), jnp.float32).at[:B, 0].set(
        x.astype(jnp.float32))

    # Explicit VMEM budget from the real per-step footprint (double-buffered
    # idx/out tiles + resident x + chunked select/compare temps), with margin.
    io_bytes = 2 * (2 * TP * 4) * 2 + 2 * B_pad * 4
    tmp_bytes = 6 * CB * TP * 4
    vmem_limit = int(min(64 << 20, max(16 << 20, 2 * (io_bytes + tmp_bytes))))

    out = pl.pallas_call(
        functools.partial(_pair_kernel, cb=CB),
        out_shape=jax.ShapeDtypeStruct((2, P_pad), jnp.float32),
        grid=(n_tiles,),
        in_specs=[
            pl.BlockSpec((B_pad, 1), lambda p: (0, 0)),   # full x, resident
            pl.BlockSpec((2, TP), lambda p: (0, p)),      # merged i/j indices
        ],
        out_specs=pl.BlockSpec((2, TP), lambda p: (0, p)),
        compiler_params=pltpu.CompilerParams(
            dimension_semantics=("parallel",),
            vmem_limit_bytes=vmem_limit,
        ),
    )(x_col, idx)

    return out[0, :P], out[1, :P]


if __name__ == "__main__":
    batch_size = 18  # module default -> pairs = 153
    key = jax.random.PRNGKey(0)
    x = jax.random.normal(key, (batch_size,), dtype=jnp.float32)

    # Force the Pallas path so the kernel actually runs at this small size.
    x1, x2 = pair_generation(x, batch_size, use_pallas=True)
    jax.block_until_ready((x1, x2))

    # Reference check (pure numpy).
    ii, jj = np.triu_indices(batch_size, k=1)
    ref_x1 = np.asarray(x)[ii]
    ref_x2 = np.asarray(x)[jj]
    np.testing.assert_allclose(np.asarray(x1), ref_x1, rtol=0, atol=0)
    np.testing.assert_allclose(np.asarray(x2), ref_x2, rtol=0, atol=0)

    print("KERNEL_OK")
</pallas_src>

<mosaic_0001>
module attributes {stable_mosaic.version = 11 : i64} {
  func.func @_pair_kernel(%arg0: i32, %arg1: memref<24x1xf32, #tpu.memory_space<vmem>>, %arg2: memref<2x128xi32, #tpu.memory_space<vmem>>, %arg3: memref<2x128xf32, #tpu.memory_space<vmem>>) attributes {dimension_semantics = [#tpu.dimension_semantics<parallel>], iteration_bounds = array<i64: 2>, scalar_prefetch = 0 : i64, scratch_operands = 0 : i64, tpu.core_type = #tpu.core_type<tc>, window_params = [{pipeline_mode = #tpu.pipeline_mode<synchronous>, transform_indices = @transform_0, window_bounds = array<i64: 24, 1>}, {transform_indices = @transform_1, window_bounds = array<i64: 2, 128>}, {transform_indices = @transform_2, window_bounds = array<i64: 2, 128>}]} {
    %c0 = arith.constant 0 : index
    %c0_0 = arith.constant 0 : index
    %0 = vector.load %arg2[%c0, %c0_0] : memref<2x128xi32, #tpu.memory_space<vmem>>, vector<1x128xi32>
    %c1 = arith.constant 1 : index
    %c0_1 = arith.constant 0 : index
    %1 = vector.load %arg2[%c1, %c0_1] : memref<2x128xi32, #tpu.memory_space<vmem>>, vector<1x128xi32>
    %cst = arith.constant 0.000000e+00 : f32
    %2 = vector.broadcast %cst : f32 to vector<1x128xf32>
    %c0_i32 = arith.constant 0 : i32
    %c24_i32 = arith.constant 24 : i32
    %3 = arith.muli %c0_i32, %c24_i32 : i32
    %4 = tpu.assume_multiple %3, 24 : i32
    %5 = arith.index_cast %4 : i32 to index
    %c0_2 = arith.constant 0 : index
    %6 = vector.load %arg1[%5, %c0_2] : memref<24x1xf32, #tpu.memory_space<vmem>>, vector<24x1xf32>
    %7 = tpu.iota {dimensions = array<i32: 0>} : vector<24x1xi32>
    %8 = vector.broadcast %4 : i32 to vector<24x1xi32>
    %9 = arith.addi %7, %8 : vector<24x1xi32>
    %10 = vector.broadcast %9 : vector<24x1xi32> to vector<24x128xi32>
    %11 = vector.broadcast %0 : vector<1x128xi32> to vector<24x128xi32>
    %12 = arith.cmpi eq, %10, %11 : vector<24x128xi32>
    %13 = vector.broadcast %9 : vector<24x1xi32> to vector<24x128xi32>
    %14 = vector.broadcast %1 : vector<1x128xi32> to vector<24x128xi32>
    %15 = arith.cmpi eq, %13, %14 : vector<24x128xi32>
    %cst_3 = arith.constant 0.000000e+00 : f32
    %16 = vector.shape_cast %6 : vector<24x1xf32> to vector<24x1xf32>
    %17 = vector.broadcast %16 : vector<24x1xf32> to vector<24x128xf32>
    %18 = vector.broadcast %cst_3 : f32 to vector<24x128xf32>
    %19 = arith.select %12, %17, %18 : vector<24x128xi1>, vector<24x128xf32>
    %cst_4 = arith.constant dense<0.000000e+00> : vector<128xf32>
    %20 = vector.multi_reduction <add>, %19, %cst_4 [0] : vector<24x128xf32> to vector<128xf32>
    %21 = vector.shape_cast %20 : vector<128xf32> to vector<1x128xf32>
    %22 = arith.addf %2, %21 : vector<1x128xf32>
    %cst_5 = arith.constant 0.000000e+00 : f32
    %23 = vector.shape_cast %6 : vector<24x1xf32> to vector<24x1xf32>
    %24 = vector.broadcast %23 : vector<24x1xf32> to vector<24x128xf32>
    %25 = vector.broadcast %cst_5 : f32 to vector<24x128xf32>
    %26 = arith.select %15, %24, %25 : vector<24x128xi1>, vector<24x128xf32>
    %cst_6 = arith.constant dense<0.000000e+00> : vector<128xf32>
    %27 = vector.multi_reduction <add>, %26, %cst_6 [0] : vector<24x128xf32> to vector<128xf32>
    %28 = vector.shape_cast %27 : vector<128xf32> to vector<1x128xf32>
    %29 = arith.addf %2, %28 : vector<1x128xf32>
    %c1_i32 = arith.constant 1 : i32
    %c0_7 = arith.constant 0 : index
    %c0_8 = arith.constant 0 : index
    %30 = vector.load %arg3[%c0_7, %c0_8] : memref<2x128xf32, #tpu.memory_space<vmem>>, vector<1x128xf32>
    tpu.vector_store %arg3[%c0_7, %c0_8], %22 {strides = array<i32>} : memref<2x128xf32, #tpu.memory_space<vmem>>, vector<1x128xf32>,
    %c1_9 = arith.constant 1 : index
    %c0_10 = arith.constant 0 : index
    %31 = vector.load %arg3[%c1_9, %c0_10] : memref<2x128xf32, #tpu.memory_space<vmem>>, vector<1x128xf32>
    tpu.vector_store %arg3[%c1_9, %c0_10], %29 {strides = array<i32>} : memref<2x128xf32, #tpu.memory_space<vmem>>, vector<1x128xf32>,
    return
  }
  func.func @transform_0(%arg0: i32) -> (i32, i32) {
    %c0_i32 = arith.constant 0 : i32
    %c0_i32_0 = arith.constant 0 : i32
    %c0_i32_1 = arith.constant 0 : i32
    return %c0_i32, %c0_i32_0 : i32, i32
  }
  func.func @transform_1(%arg0: i32) -> (i32, i32) {
    %c0_i32 = arith.constant 0 : i32
    %c0_i32_0 = arith.constant 0 : i32
    return %c0_i32, %arg0 : i32, i32
  }
  func.func @transform_2(%arg0: i32) -> (i32, i32) {
    %c0_i32 = arith.constant 0 : i32
    %c0_i32_0 = arith.constant 0 : i32
    return %c0_i32, %arg0 : i32, i32
  }
}

</mosaic_0001>

<llo_original>
// kernel: tpu_custom_call.1
$region0: #{tpu_custom_call.1}
  #allocation0 [shape = 'u32[]', space=smem, size = 0x4, offset = 0x4, fixed_abs, tag = 'smem constant byte address 0x4 - core index']
  #allocation1 [shape = 'u32[144,128]{1,0:T(1,128)}', space=vmem, size = 0x12000, scoped, tag = 'internal scratch']
  %s0 = inlined_call_operand.vmem [shape: f32[24,1], index: 0, kind: input, shape index: {}]
  %s1 = inlined_call_operand.vmem [shape: s32[2,256], index: 1, kind: input, shape index: {}]
  %s2 = inlined_call_operand.hbm [shape: f32[2,256], index: 2, kind: output, shape index: {}]
  %s3 = sld [smem:[#allocation0]]
  $region41: #{tpu_custom_call.1} parent=0
    _
  %s5 = ssub.s32 1, %s3
  %s6 = scalar_select 0, %s5, %s3
  $region1: #{tpu_custom_call.1} parent=0
    #allocation2 [shape = 'u8[2048]{0}', space=vmem, size = 0x800, scoped, tag = 'output window, operand 0']
    #allocation3 [shape = 's32[2]{0}', space=sflag, size = 0x8, scoped, tag = 'scoped memory for tpu_custom_call.1']
    %7 = vsyncpa [#allocation3], 0
    %s8 = scalar_lea.sflag [#allocation3], 1
    %9 = vsyncpa %s8, 0
    loop: start=0, step=1, limit=4
    $region2: #{tpu_custom_call.1} parent=1 // loop_pre_header
      _
    $region3: #{tpu_custom_call.1} parent=1 // loop_header
      %s11 = sphi 0, %s15
      %p12 = scmp.ge.s32.totalorder %s11, 4
      %s19 = sphi 0, %s19
      %s21 = sphi 0, %s19
      %s22 = sphi 0, %s21
      %s36 = sphi 0, %s22
      %s42 = sphi 0, %s44
      %s45 = sphi 0, %s42
      %s46 = sphi 0, %s45
      %s62 = sphi 0, %s46
      %s68 = sphi 0, %s70
      %s71 = sphi 0, %s68
      %s72 = sphi 0, %s71
      %s88 = sphi 0, %s72
    $region4: #{tpu_custom_call.1} parent=1 // loop_header_branch
      %14 = sbr.rel (%p12) target = $region8
    $region5: #{tpu_custom_call.1} parent=1 // loop_body
      %s16 = ssub.s32 %s11, 1
      %s17 = ssub.s32 %s11, 2
      %s18 = sadd.s32 %s11, 1
      %s20 = sadd.s32 %s19, 1
      %p23 = scmp.eq.s32.totalorder %s11, 1
      %p24 = scmp.ne.s32.totalorder %s19, %s21
      %p25 = scmp.eq.s32.totalorder %s11, 0
      %p26 = por %p24, %p25
      %p27 = scmp.ne.s32.totalorder %s19, %s21
      %p28 = scmp.eq.s32.totalorder %s16, 1
      %p29 = por %p27, %p28
      %p30 = scmp.ne.s32.totalorder %s21, %s22
      %p31 = scmp.eq.s32.totalorder %s16, 0
      %p32 = por %p30, %p31
      %p33 = scmp.ne.s32.totalorder %s21, %s22
      %p34 = scmp.eq.s32.totalorder %s17, 1
      %p35 = por %p33, %p34
      %p37 = scmp.ne.s32.totalorder %s22, %s36
      %p38 = scmp.eq.s32.totalorder %s17, 0
      %p39 = por %p37, %p38
      %s40 = ssub.s32 %s11, %s18
      %p41 = scmp.eq.s32.totalorder %s40, 0
      %s43 = sadd.s32 %s42, 1
      %s44 = scalar_select %p41, %s42, %s43
      %p47 = pneg %p41
      %p48 = scmp.eq.s32.totalorder %s11, 1
      %p49 = por %p47, %p48
      %p50 = scmp.ne.s32.totalorder %s42, %s45
      %p51 = scmp.eq.s32.totalorder %s11, 0
      %p52 = por %p50, %p51
      %p53 = scmp.ne.s32.totalorder %s42, %s45
      %p54 = scmp.eq.s32.totalorder %s16, 1
      %p55 = por %p53, %p54
      %p56 = scmp.ne.s32.totalorder %s45, %s46
      %p57 = scmp.eq.s32.totalorder %s16, 0
      %p58 = por %p56, %p57
      %p59 = scmp.ne.s32.totalorder %s45, %s46
      %p60 = scmp.eq.s32.totalorder %s17, 1
      %p61 = por %p59, %p60
      %p63 = scmp.ne.s32.totalorder %s46, %s62
      %p64 = scmp.eq.s32.totalorder %s17, 0
      %p65 = por %p63, %p64
      %s66 = ssub.s32 %s11, %s18
      %p67 = scmp.eq.s32.totalorder %s66, 0
      %s69 = sadd.s32 %s68, 1
      %s70 = scalar_select %p67, %s68, %s69
      %p73 = pneg %p67
      %p74 = scmp.eq.s32.totalorder %s11, 1
      %p75 = por %p73, %p74
      %p76 = scmp.ne.s32.totalorder %s68, %s71
      %p77 = scmp.eq.s32.totalorder %s11, 0
      %p78 = por %p76, %p77
      %p79 = scmp.ne.s32.totalorder %s68, %s71
      %p80 = scmp.eq.s32.totalorder %s16, 1
      %p81 = por %p79, %p80
      %p82 = scmp.ne.s32.totalorder %s71, %s72
      %p83 = scmp.eq.s32.totalorder %s16, 0
      %p84 = por %p82, %p83
      %p85 = scmp.ne.s32.totalorder %s71, %s72
      %p86 = scmp.eq.s32.totalorder %s17, 1
      %p87 = por %p85, %p86
      %p89 = scmp.ne.s32.totalorder %s72, %s88
      %p90 = scmp.eq.s32.totalorder %s17, 0
      %p91 = por %p89, %p90
      %p92 = scmp.le.s32.totalorder 1, %s11
      %p93 = scmp.lt.s32.totalorder %s11, 3
      %p94 = pnand %p92, %p93
      %p95 = pneg %p94
      // Predicated region
      $region9: #{tpu_custom_call.1} parent=5 // pred_check
        _
      $region10: #{tpu_custom_call.1} parent=5 // pred_check_branch
        %97 = sbr.rel (%p94) target = $region12
      $region11: #{tpu_custom_call.1} parent=5 // pred_region
        %s98 = ssub.s32 %s11, 1
        // Predicated region
        $region13: #{tpu_custom_call.1} parent=11 // pred_check
          %p99 = pneg %p32
        $region14: #{tpu_custom_call.1} parent=11 // pred_check_branch
          %101 = sbr.rel (%p99) target = $region16
        $region15: #{tpu_custom_call.1} parent=11 // pred_region
          _
        $region16: #{tpu_custom_call.1} parent=11 // pred_fallthru
          _
      $region12: #{tpu_custom_call.1} parent=5 // pred_fallthru
        _
      %p102 = scmp.lt.s32.totalorder %s11, 2
      // Predicated region
      $region17: #{tpu_custom_call.1} parent=5 // pred_check
        %p103 = pneg %p102
      $region18: #{tpu_custom_call.1} parent=5 // pred_check_branch
        %105 = sbr.rel (%p103) target = $region20
      $region19: #{tpu_custom_call.1} parent=5 // pred_region
        // Predicated region
        $region21: #{tpu_custom_call.1} parent=19 // pred_check
          %p106 = pneg %p52
        $region22: #{tpu_custom_call.1} parent=19 // pred_check_branch
          %108 = sbr.rel (%p106) target = $region24
        $region23: #{tpu_custom_call.1} parent=19 // pred_region
          %p109 = scmp.lt.s32.totalorder %s11, 1
          %s110 = scalar_select %p109, %s11, 1
          %s111 = smul.addr %s110, 2
          %s112 = scalar_lea.vmem %s1, %s111
        $region24: #{tpu_custom_call.1} parent=19 // pred_fallthru
          _
      $region20: #{tpu_custom_call.1} parent=5 // pred_fallthru
        _
      %p113 = scmp.le.s32.totalorder 1, %s11
      %p114 = scmp.lt.s32.totalorder %s11, 3
      %p115 = pnand %p113, %p114
      %p116 = pneg %p115
      // Predicated region
      $region25: #{tpu_custom_call.1} parent=5 // pred_check
        _
      $region26: #{tpu_custom_call.1} parent=5 // pred_check_branch
        %118 = sbr.rel (%p115) target = $region28
      $region27: #{tpu_custom_call.1} parent=5 // pred_region
        %s119 = ssub.s32 %s11, 1
        %p120 = pneg %p32
        %p121 = pneg %p29
        %p122 = scmp.lt.s32.totalorder %s16, 1
        %s123 = scalar_select %p122, %s16, 1
        %s124 = smul.addr %s123, 2
        %s125 = scalar_lea.vmem %s1, %s124
        %p126 = pneg %p58
        %p127 = pneg %p55
        %p128 = pneg %p84
        %p129 = pneg %p81
        %s130 = sand.u32 %s71, 1
        %s131 = scalar_lea.sflag [#allocation3], %s130
        %s132 = sand.u32 %s71, 1
        %s133 = smul.addr %s132, 2
        %s134 = scalar_lea.vmem [#allocation2], %s133
        %p135 = scmp.lt.s32.totalorder %s16, 1
        %s136 = scalar_select %p135, %s16, 1
        %s137 = smul.addr %s136, 2
        %s138 = scalar_lea.vmem %s1, %s137
        %v139 = vld [vmem:[%s138] sm:$0x1]
        %v140 = vld [vmem:[%s138 + $0x1] sm:$0x1]
        %v141 = vld [vmem:[%s0] sm:$0xff]
        %v142 = vld [vmem:[%s0 + $0x8] sm:$0xff]
        %v143 = vld [vmem:[%s0 + $0x10] sm:$0xff]
        %v144 = vlaneseq
        %v145 = vshrl.u32 %v144, 7
        %v146 = vadd.s32 %v145, 8
        %v147 = vadd.s32 %v145, 16
        %v148 = vstv 0
        %v149 = vadd.s32 %v145, %v148
        %v150 = vadd.s32 %v146, %v148
        %v151 = vadd.s32 %v147, %v148
        %v152 = vlaneseq
        %v153 = vshrl.u32 %v152, 7
        %v154 = vsub.s32 0, %v153
        %v155 = vrot.slane %v139, %v154
        %vm156 = vcmp.eq.s32.totalorder %v149, %v155
        %vm157 = vcmp.eq.s32.totalorder %v150, %v155
        %vm158 = vcmp.eq.s32.totalorder %v151, %v155
        %v159 = vlaneseq
        %v160 = vshrl.u32 %v159, 7
        %v161 = vsub.s32 0, %v160
        %v162 = vrot.slane %v140, %v161
        %vm163 = vcmp.eq.s32.totalorder %v149, %v162
        %vm164 = vcmp.eq.s32.totalorder %v150, %v162
        %vm165 = vcmp.eq.s32.totalorder %v151, %v162
        %167 = vset.pattern.permute.xlu0 0
        %168 = vperm.xlu0 %167, %v141
        %v169 = vpop.permute.xlu0 %168
        %172 = vset.pattern.permute.xlu0 0
        %173 = vperm.xlu0 %172, %v142
        %v174 = vpop.permute.xlu0 %173
        %177 = vset.pattern.permute.xlu0 0
        %178 = vperm.xlu0 %177, %v143
        %v179 = vpop.permute.xlu0 %178
        %v181 = vsel %vm156, %v169, 0.0
        %v182 = vsel %vm157, %v174, 0.0
        %v183 = vsel %vm158, %v179, 0.0
        %v184 = vadd.f32 %v181, %v182
        %v185 = vadd.f32 %v184, %v183
        %v186 = vrot.slane %v185, 4
        %v187 = vadd.f32 %v185, %v186
        %v188 = vrot.slane %v187, 2
        %v189 = vadd.f32 %v187, %v188
        %v190 = vrot.slane %v189, 1
        %v191 = vadd.f32 %v189, %v190
        %v192 = vadd.f32 %v191, 0.0
        %v193 = vsel %vm163, %v169, 0.0
        %v194 = vsel %vm164, %v174, 0.0
        %v195 = vsel %vm165, %v179, 0.0
        %v196 = vadd.f32 %v193, %v194
        %v197 = vadd.f32 %v196, %v195
        %v198 = vrot.slane %v197, 4
        %v199 = vadd.f32 %v197, %v198
        %v200 = vrot.slane %v199, 2
        %v201 = vadd.f32 %v199, %v200
        %v202 = vrot.slane %v201, 1
        %v203 = vadd.f32 %v201, %v202
        %v204 = vadd.f32 %v203, 0.0
        %205 = vst [vmem:[%s134] sm:$0x1] %v192
        %206 = vst [vmem:[%s134 + $0x1] sm:$0x1] %v204
        %s207 = sand.u32 %s71, 1
        %s208 = scalar_lea.sflag [#allocation3], %s207
        %s209 = sand.u32 %s71, 1
        %s210 = smul.addr %s209, 2
        %s211 = scalar_lea.vmem [#allocation2], %s210
        // Predicated region
        $region29: #{tpu_custom_call.1} parent=27 // pred_check
          %p212 = pneg %p81
        $region30: #{tpu_custom_call.1} parent=27 // pred_check_branch
          %214 = sbr.rel (%p212) target = $region32
        $region31: #{tpu_custom_call.1} parent=27 // pred_region
          %s216 = ssub.s32 32, 32
          %217 = vsyncadd %s208, %s216
          %s218 = smul.addr %s16, 32
          %s219 = scalar_lea.hbm %s2, %s218
          %s221 = sshll.u32 %s211, 4
          %s222 = int_to_ptr.vmem [resolvable:$true] %s221
          %224 = dma.vmem_to_hbm [thread:$0]  %s222, 32, %s219, %s208
        $region32: #{tpu_custom_call.1} parent=27 // pred_fallthru
          _
      $region28: #{tpu_custom_call.1} parent=5 // pred_fallthru
        _
      %p225 = scmp.le.s32.totalorder 2, %s11
      // Predicated region
      $region33: #{tpu_custom_call.1} parent=5 // pred_check
        %p226 = pneg %p225
      $region34: #{tpu_custom_call.1} parent=5 // pred_check_branch
        %228 = sbr.rel (%p226) target = $region36
      $region35: #{tpu_custom_call.1} parent=5 // pred_region
        %s229 = ssub.s32 %s11, 2
        // Predicated region
        $region37: #{tpu_custom_call.1} parent=35 // pred_check
          %p230 = pneg %p87
        $region38: #{tpu_custom_call.1} parent=35 // pred_check_branch
          %232 = sbr.rel (%p230) target = $region40
        $region39: #{tpu_custom_call.1} parent=35 // pred_region
          %s233 = sand.u32 %s72, 1
          %s234 = scalar_lea.sflag [#allocation3], %s233
          %s235 = sand.u32 %s72, 1
          %s236 = smul.addr %s235, 2
          %s237 = scalar_lea.vmem [#allocation2], %s236
          %238 = dma.done %s234, 32
        $region40: #{tpu_custom_call.1} parent=35 // pred_fallthru
          _
      $region36: #{tpu_custom_call.1} parent=5 // pred_fallthru
        _
    $region6: #{tpu_custom_call.1} parent=1 // loop_footer
      %s15 = sadd.s32 1, %s11
    $region7: #{tpu_custom_call.1} parent=1 // loop_footer_branch
      %10 = sbr.rel target = $region3
    $region8: #{tpu_custom_call.1} parent=1 // loop_exit
      _
    %239 = vsyncpa [#allocation3], 1
    %s240 = scalar_lea.sflag [#allocation3], 1
    %241 = vsyncpa %s240, 1

</llo_original>
